<compile_context>
chip_gen: v6e
topology: v6e:2x2x1
jax: 0.10.0
libtpu: 0.0.40
codegen_flags: <defaults>
</compile_context>

<pallas_src>
import functools

import numpy as np
import jax
import jax.numpy as jnp
from jax.experimental import pallas as pl
from jax.experimental.pallas import tpu as pltpu


def _bilinear_matrix_np(out_size: int, in_size: int) -> np.ndarray:
    """1-D bilinear interpolation matrix (out_size, in_size), align_corners=True
    (the semantics of F.upsample_bilinear)."""
    if out_size == 1:
        src = np.zeros((1,), dtype=np.float64)
    else:
        src = np.arange(out_size, dtype=np.float64) * (in_size - 1) / (out_size - 1)
    lo = np.clip(np.floor(src).astype(np.int64), 0, in_size - 1)
    hi = np.minimum(lo + 1, in_size - 1)
    frac = src - lo
    w = np.zeros((out_size, in_size), dtype=np.float64)
    rows = np.arange(out_size)
    np.add.at(w, (rows, lo), 1.0 - frac)
    np.add.at(w, (rows, hi), frac)
    return w


@functools.lru_cache(maxsize=None)
def _fused_kron_weight(in_h: int, in_w: int, sizes: tuple):
    """Compose the chain of separable align_corners=True resizes into a single
    kron-form weight K (in_h*in_w, out_h*out_w) with
        Y_flat(NC, out_h*out_w) = X_flat(NC, in_h*in_w) @ K .
    Built in numpy (float64 accumulate, float32 result) so it constant-folds
    under jit and costs nothing per call."""
    wh = np.eye(in_h, dtype=np.float64)
    ww = np.eye(in_w, dtype=np.float64)
    cur_h, cur_w = in_h, in_w
    for oh, ow in sizes:
        wh = _bilinear_matrix_np(oh, cur_h) @ wh
        ww = _bilinear_matrix_np(ow, cur_w) @ ww
        cur_h, cur_w = oh, ow
    k = np.kron(wh, ww)                       # (out_h*out_w, in_h*in_w)
    return k.T.astype(np.float32), cur_h, cur_w


def _resize_matmul_kernel(x_ref, k_ref, o_ref):
    # x_ref: (NC, Hin*Win)         lane-dense flattened input planes
    # k_ref: (Hin*Win, Hout*Wout)  fused kron interpolation weight (constant)
    # o_ref: (NC, Hout*Wout)       lane-dense flattened output planes
    o_ref[...] = jnp.dot(x_ref[...], k_ref[...],
                         preferred_element_type=jnp.float32)


def _fused_bilinear_upsample(x_nchw, sizes):
    """Chain of align_corners=True bilinear resizes fused into a single Pallas
    matmul kernel (exact: the resizes are linear maps)."""
    n, c, in_h, in_w = x_nchw.shape
    nc = n * c

    k_np, out_h, out_w = _fused_kron_weight(in_h, in_w, tuple(sizes))
    k = jnp.asarray(k_np)                                   # constant under jit

    # Pure reshape (row-major contiguous) — no transpose, no copy.
    x_flat = x_nchw.astype(jnp.float32).reshape(nc, in_h * in_w)

    flops = 2 * nc * (in_h * in_w) * (out_h * out_w)
    bytes_accessed = 4 * (nc * in_h * in_w
                          + (in_h * in_w) * (out_h * out_w)
                          + nc * out_h * out_w)

    out_flat = pl.pallas_call(
        _resize_matmul_kernel,
        out_shape=jax.ShapeDtypeStruct((nc, out_h * out_w), jnp.float32),
        in_specs=[
            pl.BlockSpec(memory_space=pltpu.MemorySpace.VMEM),
            pl.BlockSpec(memory_space=pltpu.MemorySpace.VMEM),
        ],
        out_specs=pl.BlockSpec(memory_space=pltpu.MemorySpace.VMEM),
        cost_estimate=pl.CostEstimate(
            flops=flops, transcendentals=0, bytes_accessed=bytes_accessed),
    )(x_flat, k)

    # Pure reshape back to NCHW — also free.
    return out_flat.reshape(n, c, out_h, out_w)


@jax.jit
def model_forward(x):
    """Equivalent of the PyTorch Model.forward (two bilinear upsamples)."""
    return _fused_bilinear_upsample(x, sizes=((12, 12), (24, 24)))


def _reference_forward(x):
    """Pure-JAX reference: the two resizes applied separately (unfused)."""
    def resize(x, oh, ow):
        _, _, ih, iw = x.shape
        wh = jnp.asarray(_bilinear_matrix_np(oh, ih), dtype=jnp.float32)
        ww = jnp.asarray(_bilinear_matrix_np(ow, iw), dtype=jnp.float32)
        return jnp.einsum('oh,nchw,pw->ncop', wh, x.astype(jnp.float32), ww)
    return resize(resize(x, 12, 12), 24, 24)


if __name__ == "__main__":
    key = jax.random.PRNGKey(0)
    x = jax.random.normal(key, (2, 4, 16, 16), dtype=jnp.float32)

    out = jax.block_until_ready(model_forward(x))

    assert out.shape == (2, 4, 24, 24), out.shape
    ref = _reference_forward(x)
    assert jnp.allclose(out, ref, atol=1e-5, rtol=1e-5)

    print("KERNEL_OK")
</pallas_src>

<mosaic_0001>
module attributes {stable_mosaic.version = 11 : i64} {
  func.func @_resize_matmul_kernel(%arg0: memref<8x256xf32, #tpu.memory_space<vmem>>, %arg1: memref<256x576xf32, #tpu.memory_space<vmem>>, %arg2: memref<8x576xf32, #tpu.memory_space<vmem>>) attributes {dimension_semantics = [], scalar_prefetch = 0 : i64, scratch_operands = 0 : i64, tpu.core_type = #tpu.core_type<tc>} {
    %c0 = arith.constant 0 : index
    %c0_0 = arith.constant 0 : index
    %0 = vector.load %arg0[%c0, %c0_0] : memref<8x256xf32, #tpu.memory_space<vmem>>, vector<8x256xf32>
    %c0_1 = arith.constant 0 : index
    %c0_2 = arith.constant 0 : index
    %1 = vector.load %arg1[%c0_1, %c0_2] : memref<256x576xf32, #tpu.memory_space<vmem>>, vector<256x576xf32>
    %cst = arith.constant dense<0.000000e+00> : vector<8x576xf32>
    %2 = tpu.matmul %0, %1, %cst {dimension_numbers = #tpu.dot_dimension_numbers<[1], [0], [0], [1], [0, 0, 1, 1], [], []>} : vector<8x256xf32>, vector<256x576xf32>, vector<8x576xf32> -> vector<8x576xf32>
    %c0_3 = arith.constant 0 : index
    %c0_4 = arith.constant 0 : index
    %3 = vector.load %arg2[%c0_3, %c0_4] : memref<8x576xf32, #tpu.memory_space<vmem>>, vector<8x576xf32>
    tpu.vector_store %arg2[%c0_3, %c0_4], %2 {strides = array<i32>} : memref<8x576xf32, #tpu.memory_space<vmem>>, vector<8x576xf32>,
    return
  }
}

</mosaic_0001>

<llo_original>
// kernel: model_forward.1
$region0: #{model_forward.1}
  #allocation0 [shape = 'u32[]', space=smem, size = 0x4, offset = 0x4, fixed_abs, tag = 'smem constant byte address 0x4 - core index']
  #allocation1 [shape = 'u32[144,128]{1,0:T(1,128)}', space=vmem, size = 0x12000, scoped, tag = 'internal scratch']
  %s0 = inlined_call_operand.vmem [shape: f32[8,256], index: 0, kind: input, shape index: {}]
  %s1 = inlined_call_operand.hbm [shape: f32[256,576], index: 1, kind: input, shape index: {}]
  %s2 = inlined_call_operand.vmem [shape: f32[8,576], index: 2, kind: output, shape index: {}]
  %s3 = sld [smem:[#allocation0]]
  $region22: #{model_forward.1} parent=0
    _
  %s5 = ssub.s32 1, %s3
  %s6 = scalar_select 0, %s5, %s3
  $region1: #{model_forward.1} parent=0
    #allocation2 [shape = 'u8[655360]{0}', space=vmem, size = 0xa0000, scoped, tag = 'input window, operand 1, single buffered']
    #allocation3 [shape = 's32[1]{0}', space=sflag, size = 0x4, scoped, tag = 'scoped memory for model_forward.1']
    %7 = vsyncpa [#allocation3], 0
    // Predicated region
    $region2: #{model_forward.1} parent=1 // pred_check
      _
    $region3: #{model_forward.1} parent=1 // pred_check_branch
      %9 = sbr.rel (0) target = $region5
    $region4: #{model_forward.1} parent=1 // pred_region
      _
    $region5: #{model_forward.1} parent=1 // pred_fallthru
      _
    // Predicated region
    $region6: #{model_forward.1} parent=1 // pred_check
      _
    $region7: #{model_forward.1} parent=1 // pred_check_branch
      %11 = sbr.rel (0) target = $region9
    $region8: #{model_forward.1} parent=1 // pred_region
      %s13 = ssub.s32 20480, 20480
      %14 = vsyncadd [#allocation3], %s13
      %s15 = sshll.u32 [#allocation2], 4
      %s16 = int_to_ptr.vmem [resolvable:$true] %s15
      %21 = dma.hbm_to_vmem [thread:$0]  %s1, 20480, %s16, [#allocation3], 640, 640, 40
    $region9: #{model_forward.1} parent=1 // pred_fallthru
      _
    // Predicated region
    $region10: #{model_forward.1} parent=1 // pred_check
      _
    $region11: #{model_forward.1} parent=1 // pred_check_branch
      %23 = sbr.rel (0) target = $region13
    $region12: #{model_forward.1} parent=1 // pred_region
      %24 = dma.done [#allocation3], 20480
    $region13: #{model_forward.1} parent=1 // pred_fallthru
      _
    %v25 = vld [vmem:[%s0] sm:$0xff]
    %v26 = vld [vmem:[%s0 + $0x8] sm:$0xff]
    %v27 = vld [vmem:[#allocation2] sm:$0xff]
    %v28 = vld [vmem:[#allocation2 + $0x8] sm:$0xff]
    %v29 = vld [vmem:[#allocation2 + $0x10] sm:$0xff]
    %v30 = vld [vmem:[#allocation2 + $0x18] sm:$0xff]
    %v31 = vld [vmem:[#allocation2 + $0x20] sm:$0xff]
    %v32 = vld [vmem:[#allocation2 + $0x28] sm:$0xff]
    %v33 = vld [vmem:[#allocation2 + $0x30] sm:$0xff]
    %v34 = vld [vmem:[#allocation2 + $0x38] sm:$0xff]
    %v35 = vld [vmem:[#allocation2 + $0x40] sm:$0xff]
    %v36 = vld [vmem:[#allocation2 + $0x48] sm:$0xff]
    %v37 = vld [vmem:[#allocation2 + $0x50] sm:$0xff]
    %v38 = vld [vmem:[#allocation2 + $0x58] sm:$0xff]
    %v39 = vld [vmem:[#allocation2 + $0x60] sm:$0xff]
    %v40 = vld [vmem:[#allocation2 + $0x68] sm:$0xff]
    %v41 = vld [vmem:[#allocation2 + $0x70] sm:$0xff]
    %v42 = vld [vmem:[#allocation2 + $0x78] sm:$0xff]
    %v43 = vld [vmem:[#allocation2 + $0x80] sm:$0xff]
    %v44 = vld [vmem:[#allocation2 + $0x88] sm:$0xff]
    %v45 = vld [vmem:[#allocation2 + $0x90] sm:$0xff]
    %v46 = vld [vmem:[#allocation2 + $0x98] sm:$0xff]
    %v47 = vld [vmem:[#allocation2 + $0xa0] sm:$0xff]
    %v48 = vld [vmem:[#allocation2 + $0xa8] sm:$0xff]
    %v49 = vld [vmem:[#allocation2 + $0xb0] sm:$0xff]
    %v50 = vld [vmem:[#allocation2 + $0xb8] sm:$0xff]
    %v51 = vld [vmem:[#allocation2 + $0xc0] sm:$0xff]
    %v52 = vld [vmem:[#allocation2 + $0xc8] sm:$0xff]
    %v53 = vld [vmem:[#allocation2 + $0xd0] sm:$0xff]
    %v54 = vld [vmem:[#allocation2 + $0xd8] sm:$0xff]
    %v55 = vld [vmem:[#allocation2 + $0xe0] sm:$0xff]
    %v56 = vld [vmem:[#allocation2 + $0xe8] sm:$0xff]
    %v57 = vld [vmem:[#allocation2 + $0xf0] sm:$0xff]
    %v58 = vld [vmem:[#allocation2 + $0xf8] sm:$0xff]
    %v59 = vld [vmem:[#allocation2 + $0x100] sm:$0xff]
    %v60 = vld [vmem:[#allocation2 + $0x108] sm:$0xff]
    %v61 = vld [vmem:[#allocation2 + $0x110] sm:$0xff]
    %v62 = vld [vmem:[#allocation2 + $0x118] sm:$0xff]
    %v63 = vld [vmem:[#allocation2 + $0x120] sm:$0xff]
    %v64 = vld [vmem:[#allocation2 + $0x128] sm:$0xff]
    %v65 = vld [vmem:[#allocation2 + $0x130] sm:$0xff]
    %v66 = vld [vmem:[#allocation2 + $0x138] sm:$0xff]
    %v67 = vld [vmem:[#allocation2 + $0x140] sm:$0xff]
    %v68 = vld [vmem:[#allocation2 + $0x148] sm:$0xff]
    %v69 = vld [vmem:[#allocation2 + $0x150] sm:$0xff]
    %v70 = vld [vmem:[#allocation2 + $0x158] sm:$0xff]
    %v71 = vld [vmem:[#allocation2 + $0x160] sm:$0xff]
    %v72 = vld [vmem:[#allocation2 + $0x168] sm:$0xff]
    %v73 = vld [vmem:[#allocation2 + $0x170] sm:$0xff]
    %v74 = vld [vmem:[#allocation2 + $0x178] sm:$0xff]
    %v75 = vld [vmem:[#allocation2 + $0x180] sm:$0xff]
    %v76 = vld [vmem:[#allocation2 + $0x188] sm:$0xff]
    %v77 = vld [vmem:[#allocation2 + $0x190] sm:$0xff]
    %v78 = vld [vmem:[#allocation2 + $0x198] sm:$0xff]
    %v79 = vld [vmem:[#allocation2 + $0x1a0] sm:$0xff]
    %v80 = vld [vmem:[#allocation2 + $0x1a8] sm:$0xff]
    %v81 = vld [vmem:[#allocation2 + $0x1b0] sm:$0xff]
    %v82 = vld [vmem:[#allocation2 + $0x1b8] sm:$0xff]
    %v83 = vld [vmem:[#allocation2 + $0x1c0] sm:$0xff]
    %v84 = vld [vmem:[#allocation2 + $0x1c8] sm:$0xff]
    %v85 = vld [vmem:[#allocation2 + $0x1d0] sm:$0xff]
    %v86 = vld [vmem:[#allocation2 + $0x1d8] sm:$0xff]
    %v87 = vld [vmem:[#allocation2 + $0x1e0] sm:$0xff]
    %v88 = vld [vmem:[#allocation2 + $0x1e8] sm:$0xff]
    %v89 = vld [vmem:[#allocation2 + $0x1f0] sm:$0xff]
    %v90 = vld [vmem:[#allocation2 + $0x1f8] sm:$0xff]
    %v91 = vld [vmem:[#allocation2 + $0x200] sm:$0xff]
    %v92 = vld [vmem:[#allocation2 + $0x208] sm:$0xff]
    %v93 = vld [vmem:[#allocation2 + $0x210] sm:$0xff]
    %v94 = vld [vmem:[#allocation2 + $0x218] sm:$0xff]
    %v95 = vld [vmem:[#allocation2 + $0x220] sm:$0xff]
    %v96 = vld [vmem:[#allocation2 + $0x228] sm:$0xff]
    %v97 = vld [vmem:[#allocation2 + $0x230] sm:$0xff]
    %v98 = vld [vmem:[#allocation2 + $0x238] sm:$0xff]
    %v99 = vld [vmem:[#allocation2 + $0x240] sm:$0xff]
    %v100 = vld [vmem:[#allocation2 + $0x248] sm:$0xff]
    %v101 = vld [vmem:[#allocation2 + $0x250] sm:$0xff]
    %v102 = vld [vmem:[#allocation2 + $0x258] sm:$0xff]
    %v103 = vld [vmem:[#allocation2 + $0x260] sm:$0xff]
    %v104 = vld [vmem:[#allocation2 + $0x268] sm:$0xff]
    %v105 = vld [vmem:[#allocation2 + $0x270] sm:$0xff]
    %v106 = vld [vmem:[#allocation2 + $0x278] sm:$0xff]
    %v107 = vld [vmem:[#allocation2 + $0x280] sm:$0xff]
    %v108 = vld [vmem:[#allocation2 + $0x288] sm:$0xff]
    %v109 = vld [vmem:[#allocation2 + $0x290] sm:$0xff]
    %v110 = vld [vmem:[#allocation2 + $0x298] sm:$0xff]
    %v111 = vld [vmem:[#allocation2 + $0x2a0] sm:$0xff]
    %v112 = vld [vmem:[#allocation2 + $0x2a8] sm:$0xff]
    %v113 = vld [vmem:[#allocation2 + $0x2b0] sm:$0xff]
    %v114 = vld [vmem:[#allocation2 + $0x2b8] sm:$0xff]
    %v115 = vld [vmem:[#allocation2 + $0x2c0] sm:$0xff]
    %v116 = vld [vmem:[#allocation2 + $0x2c8] sm:$0xff]
    %v117 = vld [vmem:[#allocation2 + $0x2d0] sm:$0xff]
    %v118 = vld [vmem:[#allocation2 + $0x2d8] sm:$0xff]
    %v119 = vld [vmem:[#allocation2 + $0x2e0] sm:$0xff]
    %v120 = vld [vmem:[#allocation2 + $0x2e8] sm:$0xff]
    %v121 = vld [vmem:[#allocation2 + $0x2f0] sm:$0xff]
    %v122 = vld [vmem:[#allocation2 + $0x2f8] sm:$0xff]
    %v123 = vld [vmem:[#allocation2 + $0x300] sm:$0xff]
    %v124 = vld [vmem:[#allocation2 + $0x308] sm:$0xff]
    %v125 = vld [vmem:[#allocation2 + $0x310] sm:$0xff]
    %v126 = vld [vmem:[#allocation2 + $0x318] sm:$0xff]
    %v127 = vld [vmem:[#allocation2 + $0x320] sm:$0xff]
    %v128 = vld [vmem:[#allocation2 + $0x328] sm:$0xff]
    %v129 = vld [vmem:[#allocation2 + $0x330] sm:$0xff]
    %v130 = vld [vmem:[#allocation2 + $0x338] sm:$0xff]
    %v131 = vld [vmem:[#allocation2 + $0x340] sm:$0xff]
    %v132 = vld [vmem:[#allocation2 + $0x348] sm:$0xff]
    %v133 = vld [vmem:[#allocation2 + $0x350] sm:$0xff]
    %v134 = vld [vmem:[#allocation2 + $0x358] sm:$0xff]
    %v135 = vld [vmem:[#allocation2 + $0x360] sm:$0xff]
    %v136 = vld [vmem:[#allocation2 + $0x368] sm:$0xff]
    %v137 = vld [vmem:[#allocation2 + $0x370] sm:$0xff]
    %v138 = vld [vmem:[#allocation2 + $0x378] sm:$0xff]
    %v139 = vld [vmem:[#allocation2 + $0x380] sm:$0xff]
    %v140 = vld [vmem:[#allocation2 + $0x388] sm:$0xff]
    %v141 = vld [vmem:[#allocation2 + $0x390] sm:$0xff]
    %v142 = vld [vmem:[#allocation2 + $0x398] sm:$0xff]
    %v143 = vld [vmem:[#allocation2 + $0x3a0] sm:$0xff]
    %v144 = vld [vmem:[#allocation2 + $0x3a8] sm:$0xff]
    %v145 = vld [vmem:[#allocation2 + $0x3b0] sm:$0xff]
    %v146 = vld [vmem:[#allocation2 + $0x3b8] sm:$0xff]
    %v147 = vld [vmem:[#allocation2 + $0x3c0] sm:$0xff]
    %v148 = vld [vmem:[#allocation2 + $0x3c8] sm:$0xff]
    %v149 = vld [vmem:[#allocation2 + $0x3d0] sm:$0xff]
    %v150 = vld [vmem:[#allocation2 + $0x3d8] sm:$0xff]
    %v151 = vld [vmem:[#allocation2 + $0x3e0] sm:$0xff]
    %v152 = vld [vmem:[#allocation2 + $0x3e8] sm:$0xff]
    %v153 = vld [vmem:[#allocation2 + $0x3f0] sm:$0xff]
    %v154 = vld [vmem:[#allocation2 + $0x3f8] sm:$0xff]
    %v155 = vld [vmem:[#allocation2 + $0x400] sm:$0xff]
    %v156 = vld [vmem:[#allocation2 + $0x408] sm:$0xff]
    %v157 = vld [vmem:[#allocation2 + $0x410] sm:$0xff]
    %v158 = vld [vmem:[#allocation2 + $0x418] sm:$0xff]
    %v159 = vld [vmem:[#allocation2 + $0x420] sm:$0xff]
    %v160 = vld [vmem:[#allocation2 + $0x428] sm:$0xff]
    %v161 = vld [vmem:[#allocation2 + $0x430] sm:$0xff]
    %v162 = vld [vmem:[#allocation2 + $0x438] sm:$0xff]
    %v163 = vld [vmem:[#allocation2 + $0x440] sm:$0xff]
    %v164 = vld [vmem:[#allocation2 + $0x448] sm:$0xff]
    %v165 = vld [vmem:[#allocation2 + $0x450] sm:$0xff]
    %v166 = vld [vmem:[#allocation2 + $0x458] sm:$0xff]
    %v167 = vld [vmem:[#allocation2 + $0x460] sm:$0xff]
    %v168 = vld [vmem:[#allocation2 + $0x468] sm:$0xff]
    %v169 = vld [vmem:[#allocation2 + $0x470] sm:$0xff]
    %v170 = vld [vmem:[#allocation2 + $0x478] sm:$0xff]
    %v171 = vld [vmem:[#allocation2 + $0x480] sm:$0xff]
    %v172 = vld [vmem:[#allocation2 + $0x488] sm:$0xff]
    %v173 = vld [vmem:[#allocation2 + $0x490] sm:$0xff]
    %v174 = vld [vmem:[#allocation2 + $0x498] sm:$0xff]
    %v175 = vld [vmem:[#allocation2 + $0x4a0] sm:$0xff]
    %v176 = vld [vmem:[#allocation2 + $0x4a8] sm:$0xff]
    %v177 = vld [vmem:[#allocation2 + $0x4b0] sm:$0xff]
    %v178 = vld [vmem:[#allocation2 + $0x4b8] sm:$0xff]
    %v179 = vld [vmem:[#allocation2 + $0x4c0] sm:$0xff]
    %v180 = vld [vmem:[#allocation2 + $0x4c8] sm:$0xff]
    %v181 = vld [vmem:[#allocation2 + $0x4d0] sm:$0xff]
    %v182 = vld [vmem:[#allocation2 + $0x4d8] sm:$0xff]
    %v183 = vld [vmem:[#allocation2 + $0x4e0] sm:$0xff]
    %v184 = vld [vmem:[#allocation2 + $0x4e8] sm:$0xff]
    %v185 = vld [vmem:[#allocation2 + $0x4f0] sm:$0xff]
    %v186 = vld [vmem:[#allocation2 + $0x4f8] sm:$0xff]
    %187 = vmatprep.subr.mxu0 %v103
    %188 = vmatpush1.msra.mxu0 %v102
    %189 = vmatprep.subr.mxu0 %v98
    %190 = vmatpush1.msra.mxu0 %v97
    %191 = vmatprep.subr.mxu0 %v93
    %192 = vmatpush1.msra.mxu0 %v92
    %193 = vmatprep.subr.mxu0 %v88
    %194 = vmatpush1.msra.mxu0 %v87
    %195 = vmatprep.subr.mxu0 %v83
    %196 = vmatpush1.msra.mxu0 %v82
    %197 = vmatprep.subr.mxu0 %v78
    %198 = vmatpush1.msra.mxu0 %v77
    %199 = vmatprep.subr.mxu0 %v73
    %200 = vmatpush1.msra.mxu0 %v72
    %201 = vmatprep.subr.mxu0 %v68
    %202 = vmatpush1.msra.mxu0 %v67
    %203 = vmatprep.subr.mxu0 %v63
    %204 = vmatpush1.msra.mxu0 %v62
    %205 = vmatprep.subr.mxu0 %v58
    %206 = vmatpush1.msra.mxu0 %v57
    %207 = vmatprep.subr.mxu0 %v53
    %208 = vmatpush1.msra.mxu0 %v52
    %209 = vmatprep.subr.mxu0 %v48
    %210 = vmatpush1.msra.mxu0 %v47
    %211 = vmatprep.subr.mxu0 %v43
    %212 = vmatpush1.msra.mxu0 %v42
    %213 = vmatprep.subr.mxu0 %v38
    %214 = vmatpush1.msra.mxu0 %v37
    %215 = vmatprep.subr.mxu0 %v33
    %216 = vmatpush1.msra.mxu0 %v32
    %217 = vmatprep.subr.mxu0 %v28
    %218 = vmatpush1.msra.mxu0 %v27
    %219 = vmatprep.subr.mxu0 %v183
    %220 = vmatpush2.msra.mxu0 %v182
    %221 = vmatprep.subr.mxu0 %v178
    %222 = vmatpush2.msra.mxu0 %v177
    %223 = vmatprep.subr.mxu0 %v173
    %224 = vmatpush2.msra.mxu0 %v172
    %225 = vmatprep.subr.mxu0 %v168
    %226 = vmatpush2.msra.mxu0 %v167
    %227 = vmatprep.subr.mxu0 %v163
    %228 = vmatpush2.msra.mxu0 %v162
    %229 = vmatprep.subr.mxu0 %v158
    %230 = vmatpush2.msra.mxu0 %v157
    %231 = vmatprep.subr.mxu0 %v153
    %232 = vmatpush2.msra.mxu0 %v152
    %233 = vmatprep.subr.mxu0 %v148
    %234 = vmatpush2.msra.mxu0 %v147
    %235 = vmatprep.subr.mxu0 %v143
    %236 = vmatpush2.msra.mxu0 %v142
    %237 = vmatprep.subr.mxu0 %v138
    %238 = vmatpush2.msra.mxu0 %v137
    %239 = vmatprep.subr.mxu0 %v133
    %240 = vmatpush2.msra.mxu0 %v132
    %241 = vmatprep.subr.mxu0 %v128
    %242 = vmatpush2.msra.mxu0 %v127
    %243 = vmatprep.subr.mxu0 %v123
    %244 = vmatpush2.msra.mxu0 %v122
    %245 = vmatprep.subr.mxu0 %v118
    %246 = vmatpush2.msra.mxu0 %v117
    %247 = vmatprep.subr.mxu0 %v113
    %248 = vmatpush2.msra.mxu0 %v112
    %249 = vmatprep.subr.mxu0 %v108
    %250 = vmatpush2.msra.mxu0 %v107
    %251 = vmatprep.mubr.f32.mxu0 %v26
    %252 = vmatmul.mubr.f32.gmra.mxu0 %v25
    %v253 = vpop.f32.mrf.mxu0
    %v254 = vadd.f32 0.0, %v253
    %v255 = vpop.f32.mrf.mxu0
    %v256 = vadd.f32 0.0, %v255
    %257 = vdwg.mxu0
    %258 = vmatprep.subr.mxu0 %v105
    %259 = vmatpush1.msra.mxu0 %v104
    %260 = vmatprep.subr.mxu0 %v100
    %261 = vmatpush1.msra.mxu0 %v99
    %262 = vmatprep.subr.mxu0 %v95
    %263 = vmatpush1.msra.mxu0 %v94
    %264 = vmatprep.subr.mxu0 %v90
    %265 = vmatpush1.msra.mxu0 %v89
    %266 = vmatprep.subr.mxu0 %v85
    %267 = vmatpush1.msra.mxu0 %v84
    %268 = vmatprep.subr.mxu0 %v80
    %269 = vmatpush1.msra.mxu0 %v79
    %270 = vmatprep.subr.mxu0 %v75
    %271 = vmatpush1.msra.mxu0 %v74
    %272 = vmatprep.subr.mxu0 %v70
    %273 = vmatpush1.msra.mxu0 %v69
    %274 = vmatprep.subr.mxu0 %v65
    %275 = vmatpush1.msra.mxu0 %v64
    %276 = vmatprep.subr.mxu0 %v60
    %277 = vmatpush1.msra.mxu0 %v59
    %278 = vmatprep.subr.mxu0 %v55
    %279 = vmatpush1.msra.mxu0 %v54
    %280 = vmatprep.subr.mxu0 %v50
    %281 = vmatpush1.msra.mxu0 %v49
    %282 = vmatprep.subr.mxu0 %v45
    %283 = vmatpush1.msra.mxu0 %v44
    %284 = vmatprep.subr.mxu0 %v40
    %285 = vmatpush1.msra.mxu0 %v39
    %286 = vmatprep.subr.mxu0 %v35
    %287 = vmatpush1.msra.mxu0 %v34
    %288 = vmatprep.subr.mxu0 %v30
    %289 = vmatpush1.msra.mxu0 %v29
    %290 = vmatprep.subr.mxu0 %v185
    %291 = vmatpush2.msra.mxu0 %v184
    %292 = vmatprep.subr.mxu0 %v180
    %293 = vmatpush2.msra.mxu0 %v179
    %294 = vmatprep.subr.mxu0 %v175
    %295 = vmatpush2.msra.mxu0 %v174
    %296 = vmatprep.subr.mxu0 %v170
    %297 = vmatpush2.msra.mxu0 %v169
    %298 = vmatprep.subr.mxu0 %v165
    %299 = vmatpush2.msra.mxu0 %v164
    %300 = vmatprep.subr.mxu0 %v160
    %301 = vmatpush2.msra.mxu0 %v159
    %302 = vmatprep.subr.mxu0 %v155
    %303 = vmatpush2.msra.mxu0 %v154
    %304 = vmatprep.subr.mxu0 %v150
    %305 = vmatpush2.msra.mxu0 %v149
    %306 = vmatprep.subr.mxu0 %v145
    %307 = vmatpush2.msra.mxu0 %v144
    %308 = vmatprep.subr.mxu0 %v140
    %309 = vmatpush2.msra.mxu0 %v139
    %310 = vmatprep.subr.mxu0 %v135
    %311 = vmatpush2.msra.mxu0 %v134
    %312 = vmatprep.subr.mxu0 %v130
    %313 = vmatpush2.msra.mxu0 %v129
    %314 = vmatprep.subr.mxu0 %v125
    %315 = vmatpush2.msra.mxu0 %v124
    %316 = vmatprep.subr.mxu0 %v120
    %317 = vmatpush2.msra.mxu0 %v119
    %318 = vmatprep.subr.mxu0 %v115
    %319 = vmatpush2.msra.mxu0 %v114
    %320 = vmatprep.subr.mxu0 %v110
    %321 = vmatpush2.msra.mxu0 %v109
    %322 = vmatprep.mubr.f32.mxu0 %v26
    %323 = vmatmul.mubr.f32.gmra.mxu0 %v25
    %v324 = vpop.f32.mrf.mxu0
    %v325 = vadd.f32 0.0, %v324
    %v326 = vpop.f32.mrf.mxu0
    %v327 = vadd.f32 0.0, %v326
    %328 = vdwg.mxu0
    %329 = vmatprep.subr.mxu0 0.0
    %330 = vmatpush1.msra.mxu0 %v106
    %331 = vmatprep.subr.mxu0 0.0
    %332 = vmatpush1.msra.mxu0 %v101
    %333 = vmatprep.subr.mxu0 0.0
    %334 = vmatpush1.msra.mxu0 %v96
    %335 = vmatprep.subr.mxu0 0.0
    %336 = vmatpush1.msra.mxu0 %v91
    %337 = vmatprep.subr.mxu0 0.0
    %338 = vmatpush1.msra.mxu0 %v86
    %339 = vmatprep.subr.mxu0 0.0
    %340 = vmatpush1.msra.mxu0 %v81
    %341 = vmatprep.subr.mxu0 0.0
    %342 = vmatpush1.msra.mxu0 %v76
    %343 = vmatprep.subr.mxu0 0.0
    %344 = vmatpush1.msra.mxu0 %v71
    %345 = vmatprep.subr.mxu0 0.0
    %346 = vmatpush1.msra.mxu0 %v66
    %347 = vmatprep.subr.mxu0 0.0
    %348 = vmatpush1.msra.mxu0 %v61
    %349 = vmatprep.subr.mxu0 0.0
    %350 = vmatpush1.msra.mxu0 %v56
    %351 = vmatprep.subr.mxu0 0.0
    %352 = vmatpush1.msra.mxu0 %v51
    %353 = vmatprep.subr.mxu0 0.0
    %354 = vmatpush1.msra.mxu0 %v46
    %355 = vmatprep.subr.mxu0 0.0
    %356 = vmatpush1.msra.mxu0 %v41
    %357 = vmatprep.subr.mxu0 0.0
    %358 = vmatpush1.msra.mxu0 %v36
    %359 = vmatprep.subr.mxu0 0.0
    %360 = vmatpush1.msra.mxu0 %v31
    %361 = vmatprep.subr.mxu0 0.0
    %362 = vmatpush2.msra.mxu0 %v186
    %363 = vmatprep.subr.mxu0 0.0
    %364 = vmatpush2.msra.mxu0 %v181
    %365 = vmatprep.subr.mxu0 0.0
    %366 = vmatpush2.msra.mxu0 %v176
    %367 = vmatprep.subr.mxu0 0.0
    %368 = vmatpush2.msra.mxu0 %v171
    %369 = vmatprep.subr.mxu0 0.0
    %370 = vmatpush2.msra.mxu0 %v166
    %371 = vmatprep.subr.mxu0 0.0
    %372 = vmatpush2.msra.mxu0 %v161
    %373 = vmatprep.subr.mxu0 0.0
    %374 = vmatpush2.msra.mxu0 %v156
    %375 = vmatprep.subr.mxu0 0.0
    %376 = vmatpush2.msra.mxu0 %v151
    %377 = vmatprep.subr.mxu0 0.0
    %378 = vmatpush2.msra.mxu0 %v146
    %379 = vmatprep.subr.mxu0 0.0
    %380 = vmatpush2.msra.mxu0 %v141
    %381 = vmatprep.subr.mxu0 0.0
    %382 = vmatpush2.msra.mxu0 %v136
    %383 = vmatprep.subr.mxu0 0.0
    %384 = vmatpush2.msra.mxu0 %v131
    %385 = vmatprep.subr.mxu0 0.0
    %386 = vmatpush2.msra.mxu0 %v126
    %387 = vmatprep.subr.mxu0 0.0
    %388 = vmatpush2.msra.mxu0 %v121
    %389 = vmatprep.subr.mxu0 0.0
    %390 = vmatpush2.msra.mxu0 %v116
    %391 = vmatprep.subr.mxu0 0.0
    %392 = vmatpush2.msra.mxu0 %v111
    %393 = vmatprep.mubr.f32.mxu0 %v26
    %394 = vmatmul.mubr.f32.gmra.mxu0 %v25
    %v395 = vpop.f32.mrf.mxu0
    %v396 = vadd.f32 0.0, %v395
    %v397 = vpop.f32.mrf.mxu0
    %398 = vdwg.mxu0
    %399 = vst [vmem:[%s2] sm:$0xff] %v254
    %400 = vst [vmem:[%s2 + $0x8] sm:$0xff] %v256
    %401 = vst [vmem:[%s2 + $0x10] sm:$0xff] %v325
    %402 = vst [vmem:[%s2 + $0x18] sm:$0xff] %v327
    %vm403 = vcmask 523264
    %404 = vst.msk [vmem:[%s2 + $0x20] sm:$0xff] %vm403, %v396
    // Predicated region
    $region14: #{model_forward.1} parent=1 // pred_check
      _
    $region15: #{model_forward.1} parent=1 // pred_check_branch
      %406 = sbr.rel (0) target = $region17
    $region16: #{model_forward.1} parent=1 // pred_region
      _
    $region17: #{model_forward.1} parent=1 // pred_fallthru
      _
    // Predicated region
    $region18: #{model_forward.1} parent=1 // pred_check
      _
    $region19: #{model_forward.1} parent=1 // pred_check_branch
      %408 = sbr.rel (0) target = $region21
    $region20: #{model_forward.1} parent=1 // pred_region
      _
    $region21: #{model_forward.1} parent=1 // pred_fallthru
      _
    %409 = vsyncpa [#allocation3], 1

</llo_original>
